<compile_context>
chip_gen: v7x
topology: tpu7x:2x2x1
jax: 0.10.0
libtpu: 0.0.40
codegen_flags: <defaults>
</compile_context>

<pallas_src>
import math
import jax
import jax.numpy as jnp
from jax import lax
from jax.experimental import pallas as pl
from jax.experimental.pallas import tpu as pltpu

LAYER_NORM_EPS = 1e-12


def _round_up(x, m):
    return (x + m - 1) // m * m


# ---------------- fused kernel: transform + decoder ----------------
def fused_head_kernel(x_ref, w1_ref, b1_ref, g_ref, bt_ref, w2_ref, b2_ref,
                      o_ref, h_scratch):
    # Compute the transform once per row tile (inner vocab index == 0) and keep the
    # result resident in VMEM (bf16) for all vocab tiles of this row tile.
    @pl.when(pl.program_id(1) == 0)
    def _():
        # x:(TM,H) bf16 contracted with dense_w:(H_out,H_in) bf16 over the last dim
        # (PyTorch layout, no wrapper transpose) -> (TM,H_out) f32.
        h = lax.dot_general(
            x_ref[...], w1_ref[...],
            (((1,), (1,)), ((), ())),
            preferred_element_type=jnp.float32,
        ) + b1_ref[...]
        # exact GELU (erf form), matches torch.nn.functional.gelu (f32 math)
        h = 0.5 * h * (1.0 + lax.erf(h * (1.0 / math.sqrt(2.0))))
        # LayerNorm over hidden dim (biased variance, eps=1e-12).
        # NOTE: zero-padded rows give var==0; (h-mean)==0 keeps the result finite.
        mean = jnp.mean(h, axis=-1, keepdims=True)
        var = jnp.mean((h - mean) ** 2, axis=-1, keepdims=True)
        h = (h - mean) * lax.rsqrt(var + LAYER_NORM_EPS)
        h = h * g_ref[...] + bt_ref[...]
        h_scratch[...] = h.astype(h_scratch.dtype)

    # Decoder tile: (TM,H) bf16 contracted with decoder_w tile (TV,H) bf16 over H
    # -> (TM,TV) f32, plus bias.
    o_ref[...] = lax.dot_general(
        h_scratch[...], w2_ref[...],
        (((1,), (1,)), ((), ())),
        preferred_element_type=jnp.float32,
    ) + b2_ref[...]


def bert_lm_prediction_head(
    hidden_states,      # (B, S, H) float32
    dense_w,            # (H, H)  PyTorch layout (out, in)
    dense_b,            # (H,)
    ln_gamma,           # (H,)
    ln_beta,            # (H,)
    decoder_w,          # (V, H)  PyTorch layout (out, in)
    decoder_b,          # (V,)
    *,
    tm=512,             # row tile (multiple of 8) — keeps the bf16 w2 stream MXU-bound
    tv=2048,            # vocab tile (multiple of 128) — lane-dense output slab
):
    B, S, H = hidden_states.shape
    V = decoder_w.shape[0]
    rows = B * S

    # ---- effective tile sizes (shrink for small problems, keep alignment) ----
    tm_eff = min(tm, _round_up(rows, 8))
    tv_eff = min(tv, _round_up(V, 128))
    rows_p = _round_up(rows, tm_eff)
    V_p = _round_up(V, tv_eff)

    # ---- prepare / pad operands (bf16 for MXU-fed tensors, f32 accumulation) ----
    x = hidden_states.reshape(rows, H).astype(jnp.bfloat16)
    if rows_p != rows:
        x = jnp.pad(x, ((0, rows_p - rows), (0, 0)))

    w1 = dense_w.astype(jnp.bfloat16)                  # (H_out, H_in) — no transpose
    b1 = dense_b.reshape(1, H).astype(jnp.float32)
    g = ln_gamma.reshape(1, H).astype(jnp.float32)
    bt = ln_beta.reshape(1, H).astype(jnp.float32)

    w2 = decoder_w.astype(jnp.bfloat16)                # (V, H) — no transpose
    b2 = decoder_b.astype(jnp.float32)
    if V_p != V:
        w2 = jnp.pad(w2, ((0, V_p - V), (0, 0)))
        b2 = jnp.pad(b2, (0, V_p - V))
    b2 = b2.reshape(1, V_p)

    grid = (rows_p // tm_eff, V_p // tv_eff)

    # VMEM budget from actual tile sizes (+ headroom); capped under v7x's 64 MiB.
    vmem_need = (
        2 * tm_eff * H * 2                    # x tile (double-buffered, bf16)
        + 1 * H * H * 2                       # dense_w (single buffer, bf16)
        + 3 * 8 * _round_up(H, 128) * 4       # b1 / gamma / beta (single buffer, f32)
        + 2 * tv_eff * H * 2                  # decoder_w tile (double-buffered, bf16)
        + 2 * 8 * tv_eff * 4                  # decoder bias tile (double-buffered, f32)
        + 2 * tm_eff * tv_eff * 4             # output tile (double-buffered, f32)
        + tm_eff * H * 2                      # h scratch (bf16)
    )
    vmem_limit = min(56 * 1024 * 1024, max(32 * 1024 * 1024, int(vmem_need * 3 // 2)))

    logits_p = pl.pallas_call(
        fused_head_kernel,
        out_shape=jax.ShapeDtypeStruct((rows_p, V_p), jnp.float32),
        grid_spec=pltpu.PrefetchScalarGridSpec(
            num_scalar_prefetch=0,
            grid=grid,
            in_specs=[
                # x: block index constant along j -> DMA'd once per row tile
                pl.BlockSpec((tm_eff, H), lambda i, j: (i, 0)),
                # constant-index blocks: single buffer (no useless double buffer)
                pl.BlockSpec((H, H), lambda i, j: (0, 0),
                             pipeline_mode=pl.Buffered(1)),
                pl.BlockSpec((1, H), lambda i, j: (0, 0),
                             pipeline_mode=pl.Buffered(1)),
                pl.BlockSpec((1, H), lambda i, j: (0, 0),
                             pipeline_mode=pl.Buffered(1)),
                pl.BlockSpec((1, H), lambda i, j: (0, 0),
                             pipeline_mode=pl.Buffered(1)),
                # decoder weight tile: (TV, H) rows of decoder_w in PyTorch layout
                pl.BlockSpec((tv_eff, H), lambda i, j: (j, 0)),
                pl.BlockSpec((1, tv_eff), lambda i, j: (0, j)),
            ],
            out_specs=pl.BlockSpec((tm_eff, tv_eff), lambda i, j: (i, j)),
            scratch_shapes=[pltpu.VMEM((tm_eff, H), jnp.bfloat16)],
        ),
        compiler_params=pltpu.CompilerParams(
            # h scratch is carried across the vocab axis -> it must be sequenced
            # ("arbitrary"); the rows axis megacore-shards.
            dimension_semantics=("parallel", "arbitrary"),
            vmem_limit_bytes=vmem_limit,
        ),
    )(x, w1, b1, g, bt, w2, b2)

    return logits_p[:rows, :V].reshape(B, S, V)


def _reference(hidden_states, dense_w, dense_b, ln_gamma, ln_beta, decoder_w, decoder_b):
    h = hidden_states @ dense_w.T + dense_b
    h = 0.5 * h * (1.0 + lax.erf(h / jnp.sqrt(2.0)))
    mean = jnp.mean(h, axis=-1, keepdims=True)
    var = jnp.mean((h - mean) ** 2, axis=-1, keepdims=True)
    h = (h - mean) / jnp.sqrt(var + LAYER_NORM_EPS)
    h = h * ln_gamma + ln_beta
    return h @ decoder_w.T + decoder_b


if __name__ == "__main__":
    # small config: batch=2, seq=8, hidden=128, vocab=512
    B, S, H, V = 2, 8, 128, 512
    key = jax.random.PRNGKey(0)
    k0, k1, k2, k3, k4, k5 = jax.random.split(key, 6)

    hidden_states = jax.random.normal(k0, (B, S, H), dtype=jnp.float32)

    # deterministic parameter init (synthetic; no checkpoint load)
    dense_w = jax.random.normal(k1, (H, H), dtype=jnp.float32) * 0.02
    dense_b = jax.random.normal(k2, (H,), dtype=jnp.float32) * 0.02
    ln_gamma = jnp.ones((H,), dtype=jnp.float32)
    ln_beta = jnp.zeros((H,), dtype=jnp.float32)
    decoder_w = jax.random.normal(k3, (V, H), dtype=jnp.float32) * 0.02
    decoder_b = jnp.zeros((V,), dtype=jnp.float32)  # self.bias init = zeros

    out = bert_lm_prediction_head(
        hidden_states, dense_w, dense_b, ln_gamma, ln_beta, decoder_w, decoder_b
    )
    out = jax.block_until_ready(out)

    ref = _reference(
        hidden_states, dense_w, dense_b, ln_gamma, ln_beta, decoder_w, decoder_b
    )
    assert out.shape == (B, S, V)
    # bf16 MXU inputs / f32 accumulation -> relaxed tolerance vs the f32 reference
    assert jnp.allclose(out, ref, atol=2.5e-2, rtol=2.5e-2), (
        float(jnp.max(jnp.abs(out - ref)))
    )

    print("KERNEL_OK")
</pallas_src>

<mosaic_0001>
module attributes {stable_mosaic.version = 11 : i64} {
  func.func @fused_head_kernel(%arg0: i32, %arg1: i32, %arg2: memref<16x128xbf16, #tpu.memory_space<vmem>>, %arg3: memref<128x128xbf16, #tpu.memory_space<vmem>>, %arg4: memref<1x128xf32, #tpu.memory_space<vmem>>, %arg5: memref<1x128xf32, #tpu.memory_space<vmem>>, %arg6: memref<1x128xf32, #tpu.memory_space<vmem>>, %arg7: memref<512x128xbf16, #tpu.memory_space<vmem>>, %arg8: memref<1x512xf32, #tpu.memory_space<vmem>>, %arg9: memref<16x512xf32, #tpu.memory_space<vmem>>, %arg10: memref<16x128xbf16, #tpu.memory_space<vmem>>) attributes {dimension_semantics = [#tpu.dimension_semantics<parallel>, #tpu.dimension_semantics<arbitrary>], iteration_bounds = array<i64: 1, 1>, scalar_prefetch = 0 : i64, scratch_operands = 1 : i64, tpu.core_type = #tpu.core_type<tc>, window_params = [{transform_indices = @transform_0, window_bounds = array<i64: 16, 128>}, {pipeline_mode = #tpu.pipeline_mode<synchronous>, transform_indices = @transform_1, window_bounds = array<i64: 128, 128>}, {pipeline_mode = #tpu.pipeline_mode<synchronous>, transform_indices = @transform_2, window_bounds = array<i64: 1, 128>}, {pipeline_mode = #tpu.pipeline_mode<synchronous>, transform_indices = @transform_3, window_bounds = array<i64: 1, 128>}, {pipeline_mode = #tpu.pipeline_mode<synchronous>, transform_indices = @transform_4, window_bounds = array<i64: 1, 128>}, {transform_indices = @transform_5, window_bounds = array<i64: 512, 128>}, {transform_indices = @transform_6, window_bounds = array<i64: 1, 512>}, {transform_indices = @transform_7, window_bounds = array<i64: 16, 512>}]} {
    %c0_i32 = arith.constant 0 : i32
    %0 = arith.cmpi eq, %arg1, %c0_i32 : i32
    %1 = arith.extui %0 : i1 to i32
    %c0_i32_0 = arith.constant 0 : i32
    %2 = arith.cmpi ne, %1, %c0_i32_0 : i32
    scf.if %2 {
      %c0_8 = arith.constant 0 : index
      %c0_9 = arith.constant 0 : index
      %10 = vector.load %arg2[%c0_8, %c0_9] : memref<16x128xbf16, #tpu.memory_space<vmem>>, vector<16x128xbf16>
      %c0_10 = arith.constant 0 : index
      %c0_11 = arith.constant 0 : index
      %11 = vector.load %arg3[%c0_10, %c0_11] : memref<128x128xbf16, #tpu.memory_space<vmem>>, vector<128x128xbf16>
      %cst_12 = arith.constant dense<0.000000e+00> : vector<16x128xf32>
      %12 = tpu.matmul %10, %11, %cst_12 {dimension_numbers = #tpu.dot_dimension_numbers<[1], [1], [0], [0], [0, 0, 1, 0], [], []>} : vector<16x128xbf16>, vector<128x128xbf16>, vector<16x128xf32> -> vector<16x128xf32>
      %c0_13 = arith.constant 0 : index
      %c0_14 = arith.constant 0 : index
      %13 = vector.load %arg4[%c0_13, %c0_14] : memref<1x128xf32, #tpu.memory_space<vmem>>, vector<1x128xf32>
      %14 = vector.broadcast %13 : vector<1x128xf32> to vector<16x128xf32>
      %15 = arith.addf %12, %14 : vector<16x128xf32>
      %cst_15 = arith.constant 5.000000e-01 : f32
      %16 = vector.broadcast %cst_15 : f32 to vector<16x128xf32>
      %17 = arith.mulf %16, %15 : vector<16x128xf32>
      %cst_16 = arith.constant 0.707106769 : f32
      %18 = vector.broadcast %cst_16 : f32 to vector<16x128xf32>
      %19 = arith.mulf %15, %18 : vector<16x128xf32>
      %20 = math.erf %19 : vector<16x128xf32>
      %cst_17 = arith.constant 1.000000e+00 : f32
      %21 = vector.broadcast %cst_17 : f32 to vector<16x128xf32>
      %22 = arith.addf %21, %20 : vector<16x128xf32>
      %23 = arith.mulf %17, %22 : vector<16x128xf32>
      %cst_18 = arith.constant dense<0.000000e+00> : vector<16xf32>
      %24 = vector.multi_reduction <add>, %23, %cst_18 [1] : vector<16x128xf32> to vector<16xf32>
      %25 = vector.shape_cast %24 : vector<16xf32> to vector<16x1xf32>
      %cst_19 = arith.constant 1.280000e+02 : f32
      %26 = vector.broadcast %cst_19 : f32 to vector<16x1xf32>
      %27 = arith.divf %25, %26 : vector<16x1xf32>
      %28 = vector.broadcast %27 : vector<16x1xf32> to vector<16x128xf32>
      %29 = arith.subf %23, %28 : vector<16x128xf32>
      %30 = arith.mulf %29, %29 : vector<16x128xf32>
      %cst_20 = arith.constant dense<0.000000e+00> : vector<16xf32>
      %31 = vector.multi_reduction <add>, %30, %cst_20 [1] : vector<16x128xf32> to vector<16xf32>
      %32 = vector.shape_cast %31 : vector<16xf32> to vector<16x1xf32>
      %cst_21 = arith.constant 1.280000e+02 : f32
      %33 = vector.broadcast %cst_21 : f32 to vector<16x1xf32>
      %34 = arith.divf %32, %33 : vector<16x1xf32>
      %35 = vector.broadcast %27 : vector<16x1xf32> to vector<16x128xf32>
      %36 = arith.subf %23, %35 : vector<16x128xf32>
      %cst_22 = arith.constant 9.99999996E-13 : f32
      %37 = vector.broadcast %cst_22 : f32 to vector<16x1xf32>
      %38 = arith.addf %34, %37 : vector<16x1xf32>
      %39 = math.rsqrt %38 : vector<16x1xf32>
      %40 = vector.broadcast %39 : vector<16x1xf32> to vector<16x128xf32>
      %41 = arith.mulf %36, %40 : vector<16x128xf32>
      %c0_23 = arith.constant 0 : index
      %c0_24 = arith.constant 0 : index
      %42 = vector.load %arg5[%c0_23, %c0_24] : memref<1x128xf32, #tpu.memory_space<vmem>>, vector<1x128xf32>
      %43 = vector.broadcast %42 : vector<1x128xf32> to vector<16x128xf32>
      %44 = arith.mulf %41, %43 : vector<16x128xf32>
      %c0_25 = arith.constant 0 : index
      %c0_26 = arith.constant 0 : index
      %45 = vector.load %arg6[%c0_25, %c0_26] : memref<1x128xf32, #tpu.memory_space<vmem>>, vector<1x128xf32>
      %46 = vector.broadcast %45 : vector<1x128xf32> to vector<16x128xf32>
      %47 = arith.addf %44, %46 : vector<16x128xf32>
      %48 = arith.truncf %47 : vector<16x128xf32> to vector<16x128xbf16>
      %c0_27 = arith.constant 0 : index
      %c0_28 = arith.constant 0 : index
      %49 = vector.load %arg10[%c0_27, %c0_28] : memref<16x128xbf16, #tpu.memory_space<vmem>>, vector<16x128xbf16>
      tpu.vector_store %arg10[%c0_27, %c0_28], %48 {strides = array<i32>} : memref<16x128xbf16, #tpu.memory_space<vmem>>, vector<16x128xbf16>,
    } else {
    }
    %c0 = arith.constant 0 : index
    %c0_1 = arith.constant 0 : index
    %3 = vector.load %arg10[%c0, %c0_1] : memref<16x128xbf16, #tpu.memory_space<vmem>>, vector<16x128xbf16>
    %c0_2 = arith.constant 0 : index
    %c0_3 = arith.constant 0 : index
    %4 = vector.load %arg7[%c0_2, %c0_3] : memref<512x128xbf16, #tpu.memory_space<vmem>>, vector<512x128xbf16>
    %cst = arith.constant dense<0.000000e+00> : vector<16x512xf32>
    %5 = tpu.matmul %3, %4, %cst {dimension_numbers = #tpu.dot_dimension_numbers<[1], [1], [0], [0], [0, 0, 1, 0], [], []>} : vector<16x128xbf16>, vector<512x128xbf16>, vector<16x512xf32> -> vector<16x512xf32>
    %c0_4 = arith.constant 0 : index
    %c0_5 = arith.constant 0 : index
    %6 = vector.load %arg8[%c0_4, %c0_5] : memref<1x512xf32, #tpu.memory_space<vmem>>, vector<1x512xf32>
    %7 = vector.broadcast %6 : vector<1x512xf32> to vector<16x512xf32>
    %8 = arith.addf %5, %7 : vector<16x512xf32>
    %c0_6 = arith.constant 0 : index
    %c0_7 = arith.constant 0 : index
    %9 = vector.load %arg9[%c0_6, %c0_7] : memref<16x512xf32, #tpu.memory_space<vmem>>, vector<16x512xf32>
    tpu.vector_store %arg9[%c0_6, %c0_7], %8 {strides = array<i32>} : memref<16x512xf32, #tpu.memory_space<vmem>>, vector<16x512xf32>,
    return
  }
  func.func @transform_0(%arg0: i32, %arg1: i32) -> (i32, i32) {
    %c0_i32 = arith.constant 0 : i32
    %c0_i32_0 = arith.constant 0 : i32
    return %arg0, %c0_i32 : i32, i32
  }
  func.func @transform_1(%arg0: i32, %arg1: i32) -> (i32, i32) {
    %c0_i32 = arith.constant 0 : i32
    %c0_i32_0 = arith.constant 0 : i32
    %c0_i32_1 = arith.constant 0 : i32
    return %c0_i32, %c0_i32_0 : i32, i32
  }
  func.func @transform_2(%arg0: i32, %arg1: i32) -> (i32, i32) {
    %c0_i32 = arith.constant 0 : i32
    %c0_i32_0 = arith.constant 0 : i32
    %c0_i32_1 = arith.constant 0 : i32
    return %c0_i32, %c0_i32_0 : i32, i32
  }
  func.func @transform_3(%arg0: i32, %arg1: i32) -> (i32, i32) {
    %c0_i32 = arith.constant 0 : i32
    %c0_i32_0 = arith.constant 0 : i32
    %c0_i32_1 = arith.constant 0 : i32
    return %c0_i32, %c0_i32_0 : i32, i32
  }
  func.func @transform_4(%arg0: i32, %arg1: i32) -> (i32, i32) {
    %c0_i32 = arith.constant 0 : i32
    %c0_i32_0 = arith.constant 0 : i32
    %c0_i32_1 = arith.constant 0 : i32
    return %c0_i32, %c0_i32_0 : i32, i32
  }
  func.func @transform_5(%arg0: i32, %arg1: i32) -> (i32, i32) {
    %c0_i32 = arith.constant 0 : i32
    %c0_i32_0 = arith.constant 0 : i32
    return %arg1, %c0_i32 : i32, i32
  }
  func.func @transform_6(%arg0: i32, %arg1: i32) -> (i32, i32) {
    %c0_i32 = arith.constant 0 : i32
    %c0_i32_0 = arith.constant 0 : i32
    return %c0_i32, %arg1 : i32, i32
  }
  func.func @transform_7(%arg0: i32, %arg1: i32) -> (i32, i32) {
    %c0_i32 = arith.constant 0 : i32
    return %arg0, %arg1 : i32, i32
  }
}

</mosaic_0001>

<llo_original>
// kernel: tpu_custom_call.1
$region0: #{tpu_custom_call.1}
  #allocation0 [shape = 'u32[]', space=smem, size = 0x4, offset = 0x4, fixed_abs, tag = 'smem constant byte address 0x4 - core index']
  #allocation1 [shape = 'u32[144,128]{1,0:T(1,128)}', space=vmem, size = 0x12000, scoped, tag = 'internal scratch']
  #allocation2 [shape = 'bf16[16,128]{1,0:T(16,128)(2,1)}', space=vmem, size = 0x1000, scoped, tag = 'scratch operand']
  %s0 = inlined_call_operand.hbm [shape: bf16[16,128], index: 0, kind: input, shape index: {}]
  %s1 = inlined_call_operand.hbm [shape: bf16[128,128], index: 1, kind: input, shape index: {}]
  %s2 = inlined_call_operand.vmem [shape: f32[1,128], index: 2, kind: input, shape index: {}]
  %s3 = inlined_call_operand.vmem [shape: f32[1,128], index: 3, kind: input, shape index: {}]
  %s4 = inlined_call_operand.vmem [shape: f32[1,128], index: 4, kind: input, shape index: {}]
  %s5 = inlined_call_operand.hbm [shape: bf16[512,128], index: 5, kind: input, shape index: {}]
  %s6 = inlined_call_operand.vmem [shape: f32[1,512], index: 6, kind: input, shape index: {}]
  %s7 = inlined_call_operand.hbm [shape: f32[16,512], index: 7, kind: output, shape index: {}]
  %s8 = sld [smem:[#allocation0]]
  $region54: #{tpu_custom_call.1} parent=0
    _
  %s10 = ssub.s32 1, %s8
  %s11 = scalar_select 0, %s10, %s8
  $region1: #{tpu_custom_call.1} parent=0
    #allocation3 [shape = 'u8[4096]{0}', space=vmem, size = 0x1000, scoped, tag = 'input window, operand 0, single buffered']
    #allocation4 [shape = 's32[1]{0}', space=sflag, size = 0x4, scoped, tag = 'scoped memory for tpu_custom_call.1']
    #allocation5 [shape = 's32[1]{0}', space=sflag, size = 0x4, scoped, tag = 'scoped memory for tpu_custom_call.1']
    #allocation6 [shape = 'u8[32768]{0}', space=vmem, size = 0x8000, scoped, tag = 'input window, operand 1, single buffered']
    #allocation7 [shape = 's32[1]{0}', space=sflag, size = 0x4, scoped, tag = 'scoped memory for tpu_custom_call.1']
    #allocation8 [shape = 'u8[131072]{0}', space=vmem, size = 0x20000, scoped, tag = 'input window, operand 5, single buffered']
    #allocation9 [shape = 'u8[32768]{0}', space=vmem, size = 0x8000, scoped, tag = 'output window, operand 0, single buffered']
    %12 = vsyncpa [#allocation4], 0
    %13 = vsyncpa [#allocation7], 0
    %14 = vsyncpa [#allocation5], 0
    // Predicated region
    $region2: #{tpu_custom_call.1} parent=1 // pred_check
      _
    $region3: #{tpu_custom_call.1} parent=1 // pred_check_branch
      %16 = sbr.rel (0) target = $region5
    $region4: #{tpu_custom_call.1} parent=1 // pred_region
      %s18 = ssub.s32 128, 128
      %19 = vsyncadd [#allocation4], %s18
      %s20 = sshll.u32 [#allocation3], 4
      %s21 = int_to_ptr.vmem [resolvable:$true] %s20
      %26 = dma.hbm_to_vmem [thread:$0]  %s0, 128, %s21, [#allocation4], 64, 64, 4
    $region5: #{tpu_custom_call.1} parent=1 // pred_fallthru
      _
    // Predicated region
    $region6: #{tpu_custom_call.1} parent=1 // pred_check
      _
    $region7: #{tpu_custom_call.1} parent=1 // pred_check_branch
      %28 = sbr.rel (0) target = $region9
    $region8: #{tpu_custom_call.1} parent=1 // pred_region
      %s30 = ssub.s32 1024, 1024
      %31 = vsyncadd [#allocation7], %s30
      %s32 = sshll.u32 [#allocation6], 4
      %s33 = int_to_ptr.vmem [resolvable:$true] %s32
      %38 = dma.hbm_to_vmem [thread:$0]  %s1, 1024, %s33, [#allocation7], 64, 64, 4
    $region9: #{tpu_custom_call.1} parent=1 // pred_fallthru
      _
    // Predicated region
    $region10: #{tpu_custom_call.1} parent=1 // pred_check
      _
    $region11: #{tpu_custom_call.1} parent=1 // pred_check_branch
      %40 = sbr.rel (0) target = $region13
    $region12: #{tpu_custom_call.1} parent=1 // pred_region
      _
    $region13: #{tpu_custom_call.1} parent=1 // pred_fallthru
      _
    // Predicated region
    $region14: #{tpu_custom_call.1} parent=1 // pred_check
      _
    $region15: #{tpu_custom_call.1} parent=1 // pred_check_branch
      %42 = sbr.rel (0) target = $region17
    $region16: #{tpu_custom_call.1} parent=1 // pred_region
      _
    $region17: #{tpu_custom_call.1} parent=1 // pred_fallthru
      _
    // Predicated region
    $region18: #{tpu_custom_call.1} parent=1 // pred_check
      _
    $region19: #{tpu_custom_call.1} parent=1 // pred_check_branch
      %44 = sbr.rel (0) target = $region21
    $region20: #{tpu_custom_call.1} parent=1 // pred_region
      _
    $region21: #{tpu_custom_call.1} parent=1 // pred_fallthru
      _
    // Predicated region
    $region22: #{tpu_custom_call.1} parent=1 // pred_check
      _
    $region23: #{tpu_custom_call.1} parent=1 // pred_check_branch
      %46 = sbr.rel (0) target = $region25
    $region24: #{tpu_custom_call.1} parent=1 // pred_region
      %s48 = ssub.s32 4096, 4096
      %49 = vsyncadd [#allocation7], %s48
      %s50 = sshll.u32 [#allocation8], 4
      %s51 = int_to_ptr.vmem [resolvable:$true] %s50
      %56 = dma.hbm_to_vmem [thread:$0]  %s5, 4096, %s51, [#allocation7], 64, 64, 4
    $region25: #{tpu_custom_call.1} parent=1 // pred_fallthru
      _
    // Predicated region
    $region26: #{tpu_custom_call.1} parent=1 // pred_check
      _
    $region27: #{tpu_custom_call.1} parent=1 // pred_check_branch
      %58 = sbr.rel (0) target = $region29
    $region28: #{tpu_custom_call.1} parent=1 // pred_region
      _
    $region29: #{tpu_custom_call.1} parent=1 // pred_fallthru
      _
    // Predicated region
    $region30: #{tpu_custom_call.1} parent=1 // pred_check
      _
    $region31: #{tpu_custom_call.1} parent=1 // pred_check_branch
      %60 = sbr.rel (0) target = $region33
    $region32: #{tpu_custom_call.1} parent=1 // pred_region
      %61 = dma.done [#allocation4], 128
    $region33: #{tpu_custom_call.1} parent=1 // pred_fallthru
      _
    // Predicated region
    $region34: #{tpu_custom_call.1} parent=1 // pred_check
      _
    $region35: #{tpu_custom_call.1} parent=1 // pred_check_branch
      %63 = sbr.rel (0) target = $region37
    $region36: #{tpu_custom_call.1} parent=1 // pred_region
      %64 = dma.done [#allocation7], 1024
    $region37: #{tpu_custom_call.1} parent=1 // pred_fallthru
      _
    // Predicated region
    $region38: #{tpu_custom_call.1} parent=1 // pred_check
      _
    $region39: #{tpu_custom_call.1} parent=1 // pred_check_branch
      %66 = sbr.rel (0) target = $region41
    $region40: #{tpu_custom_call.1} parent=1 // pred_region
      %67 = dma.done [#allocation7], 4096
    $region41: #{tpu_custom_call.1} parent=1 // pred_fallthru
      _
    %p69 = scmp.eq.s32.totalorder 0, 0
    // Predicated region
    $region42: #{tpu_custom_call.1} parent=1 // pred_check
      %p70 = pneg %p69
    $region43: #{tpu_custom_call.1} parent=1 // pred_check_branch
      %72 = sbr.rel (%p70) target = $region45
    $region44: #{tpu_custom_call.1} parent=1 // pred_region
      %v73 = vld [vmem:[#allocation3] sm:$0xf]
      %v74 = vld [vmem:[#allocation3 + $0x4] sm:$0xf]
      %v75 = vld [vmem:[#allocation6] sm:$0xf]
      %v76 = vld [vmem:[#allocation6 + $0x4] sm:$0xf]
      %v77 = vld [vmem:[#allocation6 + $0x8] sm:$0xf]
      %v78 = vld [vmem:[#allocation6 + $0xc] sm:$0xf]
      %v79 = vld [vmem:[#allocation6 + $0x10] sm:$0xf]
      %v80 = vld [vmem:[#allocation6 + $0x14] sm:$0xf]
      %v81 = vld [vmem:[#allocation6 + $0x18] sm:$0xf]
      %v82 = vld [vmem:[#allocation6 + $0x1c] sm:$0xf]
      %v83 = vld [vmem:[#allocation6 + $0x20] sm:$0xf]
      %v84 = vld [vmem:[#allocation6 + $0x24] sm:$0xf]
      %v85 = vld [vmem:[#allocation6 + $0x28] sm:$0xf]
      %v86 = vld [vmem:[#allocation6 + $0x2c] sm:$0xf]
      %v87 = vld [vmem:[#allocation6 + $0x30] sm:$0xf]
      %v88 = vld [vmem:[#allocation6 + $0x34] sm:$0xf]
      %v89 = vld [vmem:[#allocation6 + $0x38] sm:$0xf]
      %v90 = vld [vmem:[#allocation6 + $0x3c] sm:$0xf]
      %v91 = vld [vmem:[%s2] sm:$0x1]
      %v93 = vlaneseq
      %v94 = vshrl.u32 %v93, 7
      %v95 = vsub.s32 0, %v94
      %v96 = vrot.slane %v91, %v95
      %v100 = vunpack.c.l.b16 %v73
      %v101 = vunpack.c.l.b16 %v74
      %v102 = vpack.c.b16 %v101, %v100
      %v120 = vunpack.c.l.b16 %v75
      %v121 = vunpack.c.l.b16 %v76
      %v122 = vunpack.c.l.b16 %v77
      %v123 = vunpack.c.l.b16 %v78
      %v124 = vunpack.c.l.b16 %v79
      %v125 = vunpack.c.l.b16 %v80
      %v126 = vunpack.c.l.b16 %v81
      %v127 = vunpack.c.l.b16 %v82
      %v128 = vunpack.c.l.b16 %v83
      %v129 = vunpack.c.l.b16 %v84
      %v130 = vunpack.c.l.b16 %v85
      %v131 = vunpack.c.l.b16 %v86
      %v132 = vunpack.c.l.b16 %v87
      %v133 = vunpack.c.l.b16 %v88
      %v134 = vunpack.c.l.b16 %v89
      %v135 = vunpack.c.l.b16 %v90
      %v136 = vpack.c.b16 %v121, %v120
      %v137 = vpack.c.b16 %v123, %v122
      %v138 = vpack.c.b16 %v125, %v124
      %v139 = vpack.c.b16 %v127, %v126
      %v140 = vpack.c.b16 %v129, %v128
      %v141 = vpack.c.b16 %v131, %v130
      %v142 = vpack.c.b16 %v133, %v132
      %v143 = vpack.c.b16 %v135, %v134
      %152 = vmatprep.subr.bf16.mxu0 0
      %153 = vmatpush1.bf16.xpose.msra.mxu0 %v136
      %154 = vmatprep.subr.bf16.mxu0 0
      %155 = vmatpush1.bf16.xpose.msra.mxu0 %v137
      %156 = vmatprep.subr.bf16.mxu0 0
      %157 = vmatpush1.bf16.xpose.msra.mxu0 %v138
      %158 = vmatprep.subr.bf16.mxu0 0
      %159 = vmatpush1.bf16.xpose.msra.mxu0 %v139
      %160 = vmatprep.subr.bf16.mxu0 0
      %161 = vmatpush1.bf16.xpose.msra.mxu0 %v140
      %162 = vmatprep.subr.bf16.mxu0 0
      %163 = vmatpush1.bf16.xpose.msra.mxu0 %v141
      %164 = vmatprep.subr.bf16.mxu0 0
      %165 = vmatpush1.bf16.xpose.msra.mxu0 %v142
      %166 = vmatprep.subr.bf16.mxu0 0
      %167 = vmatpush1.bf16.xpose.msra.mxu0 %v143
      %168 = vmatprep.subr.bf16.mxu0 0
      %169 = vmatpush1.bf16.xpose.msra.mxu0 0
      %170 = vmatprep.subr.bf16.mxu0 0
      %171 = vmatpush1.bf16.xpose.msra.mxu0 0
      %172 = vmatprep.subr.bf16.mxu0 0
      %173 = vmatpush1.bf16.xpose.msra.mxu0 0
      %174 = vmatprep.subr.bf16.mxu0 0
      %175 = vmatpush1.bf16.xpose.msra.mxu0 0
      %176 = vmatprep.subr.bf16.mxu0 0
      %177 = vmatpush1.bf16.xpose.msra.mxu0 0
      %178 = vmatprep.subr.bf16.mxu0 0
      %179 = vmatpush1.bf16.xpose.msra.mxu0 0
      %180 = vmatprep.subr.bf16.mxu0 0
      %181 = vmatpush1.bf16.xpose.msra.mxu0 0
      %182 = vmatprep.subr.bf16.mxu0 0
      %183 = vmatpush1.bf16.xpose.msra.mxu0 0
      %184 = vmatprep.mubr.bf16.mxu0 0
      %185 = vmatmul.mubr.bf16.gmra.mrb[0].mxu0 %v102
      %v186 = vpop.f32.mrb[0].mxu0
      %v187 = vadd.f32 %v96, %v186
      %v188 = vpop.f32.mrb[0].mxu0
      %v189 = vpop.f32.mrb[0].mxu0
      %v190 = vadd.f32 %v96, %v189
      %v191 = vpop.f32.mrb[0].mxu0
      %192 = vdwg.mxu0
      %v193 = vmul.f32 %v187, 0.5
      %v194 = vmul.f32 %v190, 0.5
      %v195 = vmul.f32 %v187, 0.70710677
      %v196 = vmul.f32 %v190, 0.70710677
      %v197 = verf.f32.pop %v195
      %v198 = verf.f32.pop %v196
      %v199 = vadd.f32 %v197, 1.0
      %v200 = vadd.f32 %v198, 1.0
      %v201 = vmul.f32 %v193, %v199
      %v202 = vmul.f32 %v194, %v200
      %203 = vadd.xlane.f32.xlu0 %v201
      %v204 = vpop.xlane.xlu0 %203
      %205 = vadd.xlane.f32.xlu0 %v202
      %v206 = vpop.xlane.xlu0 %205
      %v207 = vrcp.pop 128.0
      %v208 = vmul.f32 %v204, %v207
      %v209 = vmul.f32 %v206, %v207
      %v210 = vsub.f32 %v201, %v208
      %v211 = vsub.f32 %v202, %v209
      %v212 = vmul.f32 %v210, %v210
      %v213 = vmul.f32 %v211, %v211
      %214 = vadd.xlane.f32.xlu0 %v212
      %v215 = vpop.xlane.xlu0 %214
      %216 = vadd.xlane.f32.xlu0 %v213
      %v217 = vpop.xlane.xlu0 %216
      %v218 = vmul.f32 %v215, %v207
      %v219 = vmul.f32 %v217, %v207
      %v220 = vadd.f32 %v218, 1e-12
      %v221 = vadd.f32 %v219, 1e-12
      %v222 = vrsqrt.pop %v220
      %v223 = vrsqrt.pop %v221
      %v224 = vmul.f32 %v210, %v222
      %v225 = vmul.f32 %v211, %v223
      %v226 = vld [vmem:[%s3] sm:$0x1]
      %v228 = vlaneseq
      %v229 = vshrl.u32 %v228, 7
      %v230 = vsub.s32 0, %v229
      %v231 = vrot.slane %v226, %v230
      %v233 = vmul.f32 %v224, %v231
      %v234 = vmul.f32 %v225, %v231
      %v235 = vld [vmem:[%s4] sm:$0x1]
      %v237 = vlaneseq
      %v238 = vshrl.u32 %v237, 7
      %v239 = vsub.s32 0, %v238
      %v240 = vrot.slane %v235, %v239
      %v242 = vadd.f32 %v233, %v240
      %v243 = vadd.f32 %v234, %v240
      %v244 = vpack.c.bf16 %v243, %v242
      %245 = vst [vmem:[#allocation2] sm:$0xff] %v244
    $region45: #{tpu_custom_call.1} parent=1 // pred_fallthru
      _
    %v246 = vld [vmem:[#allocation2] sm:$0xff]
    %v247 = vld [vmem:[#allocation8] sm:$0xf]
    %v248 = vld [vmem:[#allocation8 + $0x4] sm:$0xf]
    %v249 = vld [vmem:[#allocation8 + $0x8] sm:$0xf]
    %v250 = vld [vmem:[#allocation8 + $0xc] sm:$0xf]
    %v251 = vld [vmem:[#allocation8 + $0x10] sm:$0xf]
    %v252 = vld [vmem:[#allocation8 + $0x14] sm:$0xf]
    %v253 = vld [vmem:[#allocation8 + $0x18] sm:$0xf]
    %v254 = vld [vmem:[#allocation8 + $0x1c] sm:$0xf]
    %v255 = vld [vmem:[#allocation8 + $0x20] sm:$0xf]
    %v256 = vld [vmem:[#allocation8 + $0x24] sm:$0xf]
    %v257 = vld [vmem:[#allocation8 + $0x28] sm:$0xf]
    %v258 = vld [vmem:[#allocation8 + $0x2c] sm:$0xf]
    %v259 = vld [vmem:[#allocation8 + $0x30] sm:$0xf]
    %v260 = vld [vmem:[#allocation8 + $0x34] sm:$0xf]
    %v261 = vld [vmem:[#allocation8 + $0x38] sm:$0xf]
    %v262 = vld [vmem:[#allocation8 + $0x3c] sm:$0xf]
    %v263 = vld [vmem:[#allocation8 + $0x40] sm:$0xf]
    %v264 = vld [vmem:[#allocation8 + $0x44] sm:$0xf]
    %v265 = vld [vmem:[#allocation8 + $0x48] sm:$0xf]
    %v266 = vld [vmem:[#allocation8 + $0x4c] sm:$0xf]
    %v267 = vld [vmem:[#allocation8 + $0x50] sm:$0xf]
    %v268 = vld [vmem:[#allocation8 + $0x54] sm:$0xf]
    %v269 = vld [vmem:[#allocation8 + $0x58] sm:$0xf]
    %v270 = vld [vmem:[#allocation8 + $0x5c] sm:$0xf]
    %v271 = vld [vmem:[#allocation8 + $0x60] sm:$0xf]
    %v272 = vld [vmem:[#allocation8 + $0x64] sm:$0xf]
    %v273 = vld [vmem:[#allocation8 + $0x68] sm:$0xf]
    %v274 = vld [vmem:[#allocation8 + $0x6c] sm:$0xf]
    %v275 = vld [vmem:[#allocation8 + $0x70] sm:$0xf]
    %v276 = vld [vmem:[#allocation8 + $0x74] sm:$0xf]
    %v277 = vld [vmem:[#allocation8 + $0x78] sm:$0xf]
    %v278 = vld [vmem:[#allocation8 + $0x7c] sm:$0xf]
    %v279 = vld [vmem:[#allocation8 + $0x80] sm:$0xf]
    %v280 = vld [vmem:[#allocation8 + $0x84] sm:$0xf]
    %v281 = vld [vmem:[#allocation8 + $0x88] sm:$0xf]
    %v282 = vld [vmem:[#allocation8 + $0x8c] sm:$0xf]
    %v283 = vld [vmem:[#allocation8 + $0x90] sm:$0xf]
    %v284 = vld [vmem:[#allocation8 + $0x94] sm:$0xf]
    %v285 = vld [vmem:[#allocation8 + $0x98] sm:$0xf]
    %v286 = vld [vmem:[#allocation8 + $0x9c] sm:$0xf]
    %v287 = vld [vmem:[#allocation8 + $0xa0] sm:$0xf]
    %v288 = vld [vmem:[#allocation8 + $0xa4] sm:$0xf]
    %v289 = vld [vmem:[#allocation8 + $0xa8] sm:$0xf]
    %v290 = vld [vmem:[#allocation8 + $0xac] sm:$0xf]
    %v291 = vld [vmem:[#allocation8 + $0xb0] sm:$0xf]
    %v292 = vld [vmem:[#allocation8 + $0xb4] sm:$0xf]
    %v293 = vld [vmem:[#allocation8 + $0xb8] sm:$0xf]
    %v294 = vld [vmem:[#allocation8 + $0xbc] sm:$0xf]
    %v295 = vld [vmem:[#allocation8 + $0xc0] sm:$0xf]
    %v296 = vld [vmem:[#allocation8 + $0xc4] sm:$0xf]
    %v297 = vld [vmem:[#allocation8 + $0xc8] sm:$0xf]
    %v298 = vld [vmem:[#allocation8 + $0xcc] sm:$0xf]
    %v299 = vld [vmem:[#allocation8 + $0xd0] sm:$0xf]
    %v300 = vld [vmem:[#allocation8 + $0xd4] sm:$0xf]
    %v301 = vld [vmem:[#allocation8 + $0xd8] sm:$0xf]
    %v302 = vld [vmem:[#allocation8 + $0xdc] sm:$0xf]
    %v303 = vld [vmem:[#allocation8 + $0xe0] sm:$0xf]
    %v304 = vld [vmem:[#allocation8 + $0xe4] sm:$0xf]
    %v305 = vld [vmem:[#allocation8 + $0xe8] sm:$0xf]
    %v306 = vld [vmem:[#allocation8 + $0xec] sm:$0xf]
    %v307 = vld [vmem:[#allocation8 + $0xf0] sm:$0xf]
    %v308 = vld [vmem:[#allocation8 + $0xf4] sm:$0xf]
    %v309 = vld [vmem:[#allocation8 + $0xf8] sm:$0xf]
    %v310 = vld [vmem:[#allocation8 + $0xfc] sm:$0xf]
    %v311 = vld [vmem:[%s6] sm:$0xf]
    %v313 = vlaneseq
    %v314 = vshrl.u32 %v313, 7
    %v315 = vsub.s32 0, %v314
    %v316 = vrot.slane %v311, %v315
    %v317 = vlaneseq
    %v318 = vshrl.u32 %v317, 7
    %v319 = vsub.s32 1, %v318
    %v320 = vrot.slane %v311, %v319
    %v321 = vlaneseq
    %v322 = vshrl.u32 %v321, 7
    %v323 = vsub.s32 2, %v322
    %v324 = vrot.slane %v311, %v323
    %v325 = vlaneseq
    %v326 = vshrl.u32 %v325, 7
    %v327 = vsub.s32 3, %v326
    %v328 = vrot.slane %v311, %v327
    %v397 = vunpack.c.l.b16 %v247
    %v398 = vunpack.c.l.b16 %v248
    %v399 = vunpack.c.l.b16 %v249
    %v400 = vunpack.c.l.b16 %v250
    %v401 = vunpack.c.l.b16 %v251
    %v402 = vunpack.c.l.b16 %v252
    %v403 = vunpack.c.l.b16 %v253
    %v404 = vunpack.c.l.b16 %v254
    %v405 = vunpack.c.l.b16 %v255
    %v406 = vunpack.c.l.b16 %v256
    %v407 = vunpack.c.l.b16 %v257
    %v408 = vunpack.c.l.b16 %v258
    %v409 = vunpack.c.l.b16 %v259
    %v410 = vunpack.c.l.b16 %v260
    %v411 = vunpack.c.l.b16 %v261
    %v412 = vunpack.c.l.b16 %v262
    %v413 = vunpack.c.l.b16 %v263
    %v414 = vunpack.c.l.b16 %v264
    %v415 = vunpack.c.l.b16 %v265
    %v416 = vunpack.c.l.b16 %v266
    %v417 = vunpack.c.l.b16 %v267
    %v418 = vunpack.c.l.b16 %v268
    %v419 = vunpack.c.l.b16 %v269
    %v420 = vunpack.c.l.b16 %v270
    %v421 = vunpack.c.l.b16 %v271
    %v422 = vunpack.c.l.b16 %v272
    %v423 = vunpack.c.l.b16 %v273
    %v424 = vunpack.c.l.b16 %v274
    %v425 = vunpack.c.l.b16 %v275
    %v426 = vunpack.c.l.b16 %v276
    %v427 = vunpack.c.l.b16 %v277
    %v428 = vunpack.c.l.b16 %v278
    %v429 = vunpack.c.l.b16 %v279
    %v430 = vunpack.c.l.b16 %v280
    %v431 = vunpack.c.l.b16 %v281
    %v432 = vunpack.c.l.b16 %v282
    %v433 = vunpack.c.l.b16 %v283
    %v434 = vunpack.c.l.b16 %v284
    %v435 = vunpack.c.l.b16 %v285
    %v436 = vunpack.c.l.b16 %v286
    %v437 = vunpack.c.l.b16 %v287
    %v438 = vunpack.c.l.b16 %v288
    %v439 = vunpack.c.l.b16 %v289
    %v440 = vunpack.c.l.b16 %v290
    %v441 = vunpack.c.l.b16 %v291
    %v442 = vunpack.c.l.b16 %v292
    %v443 = vunpack.c.l.b16 %v293
    %v444 = vunpack.c.l.b16 %v294
    %v445 = vunpack.c.l.b16 %v295
    %v446 = vunpack.c.l.b16 %v296
    %v447 = vunpack.c.l.b16 %v297
    %v448 = vunpack.c.l.b16 %v298
    %v449 = vunpack.c.l.b16 %v299
    %v450 = vunpack.c.l.b16 %v300
    %v451 = vunpack.c.l.b16 %v301
    %v452 = vunpack.c.l.b16 %v302
    %v453 = vunpack.c.l.b16 %v303
    %v454 = vunpack.c.l.b16 %v304
    %v455 = vunpack.c.l.b16 %v305
    %v456 = vunpack.c.l.b16 %v306
    %v457 = vunpack.c.l.b16 %v307
    %v458 = vunpack.c.l.b16 %v308
    %v459 = vunpack.c.l.b16 %v309
    %v460 = vunpack.c.l.b16 %v310
    %v461 = vpack.c.b16 %v398, %v397
    %v462 = vpack.c.b16 %v400, %v399
    %v463 = vpack.c.b16 %v402, %v401
    %v464 = vpack.c.b16 %v404, %v403
    %v465 = vpack.c.b16 %v406, %v405
    %v466 = vpack.c.b16 %v408, %v407
    %v467 = vpack.c.b16 %v410, %v409
    %v468 = vpack.c.b16 %v412, %v411
    %v469 = vpack.c.b16 %v414, %v413
    %v470 = vpack.c.b16 %v416, %v415
    %v471 = vpack.c.b16 %v418, %v417
    %v472 = vpack.c.b16 %v420, %v419
    %v473 = vpack.c.b16 %v422, %v421
    %v474 = vpack.c.b16 %v424, %v423
    %v475 = vpack.c.b16 %v426, %v425
    %v476 = vpack.c.b16 %v428, %v427
    %v477 = vpack.c.b16 %v430, %v429
    %v478 = vpack.c.b16 %v432, %v431
    %v479 = vpack.c.b16 %v434, %v433
    %v480 = vpack.c.b16 %v436, %v435
    %v481 = vpack.c.b16 %v438, %v437
    %v482 = vpack.c.b16 %v440, %v439
    %v483 = vpack.c.b16 %v442, %v441
    %v484 = vpack.c.b16 %v444, %v443
    %v485 = vpack.c.b16 %v446, %v445
    %v486 = vpack.c.b16 %v448, %v447
    %v487 = vpack.c.b16 %v450, %v449
    %v488 = vpack.c.b16 %v452, %v451
    %v489 = vpack.c.b16 %v454, %v453
    %v490 = vpack.c.b16 %v456, %v455
    %v491 = vpack.c.b16 %v458, %v457
    %v492 = vpack.c.b16 %v460, %v459
    %525 = vmatprep.subr.bf16.mxu0 0
    %526 = vmatpush1.bf16.xpose.msra.mxu0 %v461
    %527 = vmatprep.subr.bf16.mxu0 0
    %528 = vmatpush1.bf16.xpose.msra.mxu0 %v462
    %529 = vmatprep.subr.bf16.mxu0 0
    %530 = vmatpush1.bf16.xpose.msra.mxu0 %v463
    %531 = vmatprep.subr.bf16.mxu0 0
    %532 = vmatpush1.bf16.xpose.msra.mxu0 %v464
    %533 = vmatprep.subr.bf16.mxu0 0
    %534 = vmatpush1.bf16.xpose.msra.mxu0 %v465
    %535 = vmatprep.subr.bf16.mxu0 0
    %536 = vmatpush1.bf16.xpose.msra.mxu0 %v466
    %537 = vmatprep.subr.bf16.mxu0 0
    %538 = vmatpush1.bf16.xpose.msra.mxu0 %v467
    %539 = vmatprep.subr.bf16.mxu0 0
    %540 = vmatpush1.bf16.xpose.msra.mxu0 %v468
    %541 = vmatprep.subr.bf16.mxu0 0
    %542 = vmatpush1.bf16.xpose.msra.mxu0 %v469
    %543 = vmatprep.subr.bf16.mxu0 0
    %544 = vmatpush1.bf16.xpose.msra.mxu0 %v470
    %545 = vmatprep.subr.bf16.mxu0 0
    %546 = vmatpush1.bf16.xpose.msra.mxu0 %v471
    %547 = vmatprep.subr.bf16.mxu0 0
    %548 = vmatpush1.bf16.xpose.msra.mxu0 %v472
    %549 = vmatprep.subr.bf16.mxu0 0
    %550 = vmatpush1.bf16.xpose.msra.mxu0 %v473
    %551 = vmatprep.subr.bf16.mxu0 0
    %552 = vmatpush1.bf16.xpose.msra.mxu0 %v474
    %553 = vmatprep.subr.bf16.mxu0 0
    %554 = vmatpush1.bf16.xpose.msra.mxu0 %v475
    %555 = vmatprep.subr.bf16.mxu0 0
    %556 = vmatpush1.bf16.xpose.msra.mxu0 %v476
    %557 = vmatprep.mubr.bf16.mxu0 0
    %558 = vmatmul.mubr.bf16.gmra.mrb[0].mxu0 %v246
    %v559 = vpop.f32.mrb[0].mxu0
    %v560 = vadd.f32 %v316, %v559
    %v561 = vpop.f32.mrb[0].mxu0
    %v562 = vadd.f32 %v320, %v561
    %v563 = vpop.f32.mrb[0].mxu0
    %v564 = vadd.f32 %v316, %v563
    %v565 = vpop.f32.mrb[0].mxu0
    %v566 = vadd.f32 %v320, %v565
    %567 = vdwg.mxu0
    %568 = vmatprep.subr.bf16.mxu0 0
    %569 = vmatpush1.bf16.xpose.msra.mxu0 %v477
    %570 = vmatprep.subr.bf16.mxu0 0
    %571 = vmatpush1.bf16.xpose.msra.mxu0 %v478
    %572 = vmatprep.subr.bf16.mxu0 0
    %573 = vmatpush1.bf16.xpose.msra.mxu0 %v479
    %574 = vmatprep.subr.bf16.mxu0 0
    %575 = vmatpush1.bf16.xpose.msra.mxu0 %v480
    %576 = vmatprep.subr.bf16.mxu0 0
    %577 = vmatpush1.bf16.xpose.msra.mxu0 %v481
    %578 = vmatprep.subr.bf16.mxu0 0
    %579 = vmatpush1.bf16.xpose.msra.mxu0 %v482
    %580 = vmatprep.subr.bf16.mxu0 0
    %581 = vmatpush1.bf16.xpose.msra.mxu0 %v483
    %582 = vmatprep.subr.bf16.mxu0 0
    %583 = vmatpush1.bf16.xpose.msra.mxu0 %v484
    %584 = vmatprep.subr.bf16.mxu0 0
    %585 = vmatpush1.bf16.xpose.msra.mxu0 %v485
    %586 = vmatprep.subr.bf16.mxu0 0
    %587 = vmatpush1.bf16.xpose.msra.mxu0 %v486
    %588 = vmatprep.subr.bf16.mxu0 0
    %589 = vmatpush1.bf16.xpose.msra.mxu0 %v487
    %590 = vmatprep.subr.bf16.mxu0 0
    %591 = vmatpush1.bf16.xpose.msra.mxu0 %v488
    %592 = vmatprep.subr.bf16.mxu0 0
    %593 = vmatpush1.bf16.xpose.msra.mxu0 %v489
    %594 = vmatprep.subr.bf16.mxu0 0
    %595 = vmatpush1.bf16.xpose.msra.mxu0 %v490
    %596 = vmatprep.subr.bf16.mxu0 0
    %597 = vmatpush1.bf16.xpose.msra.mxu0 %v491
    %598 = vmatprep.subr.bf16.mxu0 0
    %599 = vmatpush1.bf16.xpose.msra.mxu0 %v492
    %600 = vmatprep.mubr.bf16.mxu0 0
    %601 = vmatmul.mubr.bf16.gmra.mrb[0].mxu0 %v246
    %v602 = vpop.f32.mrb[0].mxu0
    %v603 = vadd.f32 %v324, %v602
    %v604 = vpop.f32.mrb[0].mxu0
    %v605 = vadd.f32 %v328, %v604
    %v606 = vpop.f32.mrb[0].mxu0
    %v607 = vadd.f32 %v324, %v606
    %v608 = vpop.f32.mrb[0].mxu0
    %v609 = vadd.f32 %v328, %v608
    %610 = vdwg.mxu0
    %611 = vst [vmem:[#allocation9] sm:$0xff] %v560
    %612 = vst [vmem:[#allocation9 + $0x8] sm:$0xff] %v562
    %613 = vst [vmem:[#allocation9 + $0x10] sm:$0xff] %v603
    %614 = vst [vmem:[#allocation9 + $0x18] sm:$0xff] %v605
    %615 = vst [vmem:[#allocation9 + $0x20] sm:$0xff] %v564
    %616 = vst [vmem:[#allocation9 + $0x28] sm:$0xff] %v566
    %617 = vst [vmem:[#allocation9 + $0x30] sm:$0xff] %v607
    %618 = vst [vmem:[#allocation9 + $0x38] sm:$0xff] %v609
    // Predicated region
    $region46: #{tpu_custom_call.1} parent=1 // pred_check
      _
    $region47: #{tpu_custom_call.1} parent=1 // pred_check_branch
      %620 = sbr.rel (0) target = $region49
    $region48: #{tpu_custom_call.1} parent=1 // pred_region
      %s622 = ssub.s32 1024, 1024
      %623 = vsyncadd [#allocation5], %s622
      %s624 = sshll.u32 [#allocation9], 4
      %s625 = int_to_ptr.vmem [resolvable:$true] %s624
      %630 = dma.vmem_to_hbm [thread:$0]  %s625, 1024, %s7, [#allocation5], 512, 512, 32
    $region49: #{tpu_custom_call.1} parent=1 // pred_fallthru
      _
    // Predicated region
    $region50: #{tpu_custom_call.1} parent=1 // pred_check
      _
    $region51: #{tpu_custom_call.1} parent=1 // pred_check_branch
      %632 = sbr.rel (0) target = $region53
    $region52: #{tpu_custom_call.1} parent=1 // pred_region
      %633 = dma.done [#allocation5], 1024
    $region53: #{tpu_custom_call.1} parent=1 // pred_fallthru
      _
    %634 = vsyncpa [#allocation4], 1
    %635 = vsyncpa [#allocation7], 1
    %636 = vsyncpa [#allocation5], 1

</llo_original>
